<compile_context>
chip_gen: v7x
topology: tpu7x:2x2x1
jax: 0.10.0
libtpu: 0.0.40
codegen_flags: <defaults>
</compile_context>

<pallas_src>
import functools

import jax
import jax.numpy as jnp
from jax.experimental import pallas as pl
from jax.experimental.pallas import tpu as pltpu

LEAKY_SLOPE = 0.01
BN_EPS = 1e-5
CNN_CHANNELS = 4
CNN_KERNEL = 3
HIDDEN_PAD = 128                    # lane-dense padded width of layer 1
VMEM_LIMIT_BYTES = 32 * 1024 * 1024  # safe on v5e/v6e/v7x


def _round_up(x, m):
    return (x + m - 1) // m * m


def _leaky(x):
    return jnp.where(x > 0, x, LEAKY_SLOPE * x)


def _fc1(x_ref, bud_ref, w1x_ref, w1b_ref):
    """fc1 without bias (bias is cancelled exactly by the following BatchNorm)."""
    h = jnp.dot(x_ref[...], w1x_ref[...], preferred_element_type=jnp.float32)
    # budget column of fc1 as a rank-1 VPU update (avoids a host-side concat).
    return h + bud_ref[...].astype(jnp.float32) * w1b_ref[...].astype(jnp.float32)


def _head(h, lc_ref, mean, inv_std, gamma_ref, beta_ref,
          w2a_ref, w2b_ref, b2_ref, wc_ref, bc_ref, out_ref):
    """BN + LeakyReLU + Conv1d/max-pool features + final fc + LeakyReLU."""
    # Fold BN into one scale/shift (padded columns have gamma=beta=0 -> stay 0).
    scale = inv_std * gamma_ref[...].astype(jnp.float32)
    shift = beta_ref[...].astype(jnp.float32) - mean * scale
    h = _leaky(h * scale + shift)                                    # (TB, 128)

    # Final fc, hidden part on the MXU (lane-dense K = 128, N = 128).
    y = (jnp.dot(h.astype(w2a_ref.dtype), w2a_ref[...],
                 preferred_element_type=jnp.float32)
         + b2_ref[...].astype(jnp.float32))                          # (TB, 128)

    # Conv1d(1->4, k=3) + AdaptiveMaxPool1d(1): 3 shared shifted views of lc,
    # reused across all 4 channels; each channel feature enters the final fc
    # as a rank-1 VPU update (no K=4 matmul, no (B,4) concat).
    lc = lc_ref[...]
    l_out = lc.shape[1] - CNN_KERNEL + 1
    taps = [lc[:, k:k + l_out] for k in range(CNN_KERNEL)]
    for c in range(CNN_CHANNELS):
        acc = taps[0] * wc_ref[c, 0]
        for k in range(1, CNN_KERNEL):
            acc = acc + taps[k] * wc_ref[c, k]
        # bias is constant per channel: max(conv + b) == max(conv) + b
        feat = jnp.max(acc, axis=1, keepdims=True) + bc_ref[0, c]    # (TB, 1)
        y = y + feat * w2b_ref[c:c + 1, :].astype(jnp.float32)

    out_ref[...] = _leaky(y)


# --------------------- batch-tiled path (nb > 1) ---------------------

def _bn_stats_kernel(x_ref, bud_ref, w1x_ref, w1b_ref, stats_ref, *, inv_n):
    """Pass 1: accumulate per-feature sum / sum-of-squares of fc1 over all
    batch tiles; finalize mean (row 0) and inv_std (row 1) on the last tile.
    Zero-padded batch rows contribute exactly 0 (fc1 has no bias)."""
    i = pl.program_id(0)

    @pl.when(i == 0)
    def _():
        stats_ref[...] = jnp.zeros_like(stats_ref)

    h = _fc1(x_ref, bud_ref, w1x_ref, w1b_ref)
    stats_ref[0:1, :] += jnp.sum(h, axis=0, keepdims=True)
    stats_ref[1:2, :] += jnp.sum(h * h, axis=0, keepdims=True)

    @pl.when(i == pl.num_programs(0) - 1)
    def _():
        mean = stats_ref[0:1, :] * inv_n
        ex2 = stats_ref[1:2, :] * inv_n
        var = jnp.maximum(ex2 - mean * mean, 0.0)
        stats_ref[0:1, :] = mean
        stats_ref[1:2, :] = jax.lax.rsqrt(var + BN_EPS)


def _fwd_tile_kernel(x_ref, bud_ref, lc_ref, stats_ref, w1x_ref, w1b_ref,
                     gamma_ref, beta_ref, w2a_ref, w2b_ref, b2_ref,
                     wc_ref, bc_ref, out_ref):
    """Pass 2: full forward for one batch tile using precomputed BN stats."""
    h = _fc1(x_ref, bud_ref, w1x_ref, w1b_ref)
    _head(h, lc_ref, stats_ref[0:1, :], stats_ref[1:2, :], gamma_ref, beta_ref,
          w2a_ref, w2b_ref, b2_ref, wc_ref, bc_ref, out_ref)


# ------------------- fused single-tile path (nb == 1) -------------------

def _fwd_fused_kernel(x_ref, bud_ref, lc_ref, w1x_ref, w1b_ref,
                      gamma_ref, beta_ref, w2a_ref, w2b_ref, b2_ref,
                      wc_ref, bc_ref, out_ref, *, inv_n):
    h = _fc1(x_ref, bud_ref, w1x_ref, w1b_ref)
    mean = jnp.sum(h, axis=0, keepdims=True) * inv_n
    ex2 = jnp.sum(h * h, axis=0, keepdims=True) * inv_n
    var = jnp.maximum(ex2 - mean * mean, 0.0)
    inv_std = jax.lax.rsqrt(var + BN_EPS)
    _head(h, lc_ref, mean, inv_std, gamma_ref, beta_ref,
          w2a_ref, w2b_ref, b2_ref, wc_ref, bc_ref, out_ref)


# ------------------------------- wrapper -------------------------------

def neural_feature_extractor(x, budgets, learning_curves, kparams,
                             *, tile_b=512, use_bf16=False):
    """x: (B, input_size-1), budgets: (B,), learning_curves: (B, L).
    kparams: output of prepare_params(). use_bf16=True casts matmul operands
    to bf16 (v6e/v7x); elementwise math stays f32."""
    B = x.shape[0]
    act_dtype = jnp.bfloat16 if use_bf16 else jnp.float32

    x_a = x.astype(act_dtype)
    bud_a = budgets.astype(jnp.float32).reshape(B, 1)
    lc_a = learning_curves.astype(act_dtype)

    w1x, w1b = kparams["w1x"], kparams["w1b"]
    gamma, beta = kparams["gamma"], kparams["beta"]
    w2a, w2b, b2 = kparams["w2a"], kparams["w2b"], kparams["b2"]
    wc, bc = kparams["wc"], kparams["bc"]
    if use_bf16:
        w1x = w1x.astype(jnp.bfloat16)
        w1b = w1b.astype(jnp.bfloat16)
        w2a = w2a.astype(jnp.bfloat16)
        w2b = w2b.astype(jnp.bfloat16)

    Dx = x_a.shape[1]
    L = lc_a.shape[1]
    H = w1x.shape[1]            # padded hidden width (128)
    OUT = w2a.shape[1]          # 128

    # Batch tiling: pad B to a sublane/tile multiple.  Padded rows are all-zero
    # and contribute exactly 0 to the BN sums (fc1 has no bias), so dividing by
    # the true B keeps the train-mode statistics exact.
    TB = _round_up(max(8, min(tile_b, _round_up(B, 8))), 8)
    B_pad = _round_up(B, TB)
    if B_pad != B:
        pad = B_pad - B
        x_a = jnp.pad(x_a, ((0, pad), (0, 0)))
        bud_a = jnp.pad(bud_a, ((0, pad), (0, 0)))
        lc_a = jnp.pad(lc_a, ((0, pad), (0, 0)))
    nb = B_pad // TB
    inv_n = 1.0 / float(B)

    smem = pl.BlockSpec(memory_space=pltpu.MemorySpace.SMEM)

    if nb == 1:
        vmem = pl.BlockSpec(memory_space=pltpu.MemorySpace.VMEM)
        out = pl.pallas_call(
            functools.partial(_fwd_fused_kernel, inv_n=inv_n),
            out_shape=jax.ShapeDtypeStruct((B_pad, OUT), jnp.float32),
            in_specs=[vmem, vmem, vmem,           # x, budgets, lc
                      vmem, vmem,                 # w1x, w1b
                      vmem, vmem,                 # gamma, beta
                      vmem, vmem, vmem,           # w2a, w2b, b2
                      smem, smem],                # wc, bc
            out_specs=vmem,
            compiler_params=pltpu.CompilerParams(
                vmem_limit_bytes=VMEM_LIMIT_BYTES),
        )(x_a, bud_a, lc_a, w1x, w1b, gamma, beta, w2a, w2b, b2, wc, bc)
        return out[:B]

    # ---- pass 1: BN batch statistics accumulated over all tiles ----
    stats = pl.pallas_call(
        functools.partial(_bn_stats_kernel, inv_n=inv_n),
        out_shape=jax.ShapeDtypeStruct((8, H), jnp.float32),
        grid=(nb,),
        in_specs=[pl.BlockSpec((TB, Dx), lambda i: (i, 0)),
                  pl.BlockSpec((TB, 1), lambda i: (i, 0)),
                  pl.BlockSpec((Dx, H), lambda i: (0, 0)),
                  pl.BlockSpec((1, H), lambda i: (0, 0))],
        out_specs=pl.BlockSpec((8, H), lambda i: (0, 0)),
        compiler_params=pltpu.CompilerParams(
            dimension_semantics=("arbitrary",),
            vmem_limit_bytes=VMEM_LIMIT_BYTES),
    )(x_a, bud_a, w1x, w1b)

    # ---- pass 2: forward per batch tile (parallel -> megacore on v7x) ----
    out = pl.pallas_call(
        _fwd_tile_kernel,
        out_shape=jax.ShapeDtypeStruct((B_pad, OUT), jnp.float32),
        grid=(nb,),
        in_specs=[pl.BlockSpec((TB, Dx), lambda i: (i, 0)),
                  pl.BlockSpec((TB, 1), lambda i: (i, 0)),
                  pl.BlockSpec((TB, L), lambda i: (i, 0)),
                  pl.BlockSpec((8, H), lambda i: (0, 0)),
                  pl.BlockSpec((Dx, H), lambda i: (0, 0)),
                  pl.BlockSpec((1, H), lambda i: (0, 0)),
                  pl.BlockSpec((1, H), lambda i: (0, 0)),
                  pl.BlockSpec((1, H), lambda i: (0, 0)),
                  pl.BlockSpec((H, OUT), lambda i: (0, 0)),
                  pl.BlockSpec((CNN_CHANNELS, OUT), lambda i: (0, 0)),
                  pl.BlockSpec((1, OUT), lambda i: (0, 0)),
                  smem, smem],
        out_specs=pl.BlockSpec((TB, OUT), lambda i: (i, 0)),
        compiler_params=pltpu.CompilerParams(
            dimension_semantics=("parallel",),
            vmem_limit_bytes=VMEM_LIMIT_BYTES),
    )(x_a, bud_a, lc_a, stats, w1x, w1b, gamma, beta, w2a, w2b, b2, wc, bc)
    return out[:B]


# --------------------------- params & reference ---------------------------

def init_params(key, input_size, layer1_units=64, layer2_units=128):
    """PyTorch-style (uniform +-1/sqrt(fan_in)) params, nn.Module layout."""
    ks = jax.random.split(key, 6)

    def lin(k, fan_in, shape):
        bound = 1.0 / jnp.sqrt(fan_in)
        return jax.random.uniform(k, shape, jnp.float32, -bound, bound)

    fc2_in = layer1_units + CNN_CHANNELS
    w2 = lin(ks[2], fc2_in, (fc2_in, layer2_units))
    return {
        "w1": lin(ks[0], input_size, (input_size, layer1_units)),  # (in, out)
        "b1": lin(ks[1], input_size, (1, layer1_units)),
        "gamma": jnp.ones((1, layer1_units), jnp.float32),         # BN defaults
        "beta": jnp.zeros((1, layer1_units), jnp.float32),
        "w2a": w2[:layer1_units],                                   # (64, 128)
        "w2b": w2[layer1_units:],                                   # (4, 128)
        "b2": lin(ks[3], fc2_in, (1, layer2_units)),
        "wc": lin(ks[4], CNN_KERNEL, (CNN_CHANNELS, CNN_KERNEL)),
        "bc": lin(ks[5], CNN_KERNEL, (1, CNN_CHANNELS)),
    }


def prepare_params(params, hidden_pad=HIDDEN_PAD):
    """Repack PyTorch-layout params into the kernel's lane-dense layout.

    - fc1 split into x-part + budget row (rank-1 update in the kernel).
    - layer-1 outputs zero-padded to `hidden_pad`; gamma/beta pad with zeros
      and w2a pads with zero rows, so padded columns stay exactly 0.
    - b1 is intentionally dropped: train-mode BatchNorm subtracts the batch
      mean, which cancels a constant bias exactly.
    """
    w1 = params["w1"]                       # (input_size, layer1_units)
    h0 = w1.shape[1]
    hp = max(hidden_pad, _round_up(h0, 128))
    ph = hp - h0
    w1p = jnp.pad(w1, ((0, 0), (0, ph)))
    return {
        "w1x": w1p[:-1, :],                                # (input_size-1, 128)
        "w1b": w1p[-1:, :],                                # (1, 128)
        "gamma": jnp.pad(params["gamma"], ((0, 0), (0, ph))),
        "beta": jnp.pad(params["beta"], ((0, 0), (0, ph))),
        "w2a": jnp.pad(params["w2a"], ((0, ph), (0, 0))),  # (128, 128)
        "w2b": params["w2b"],                               # (4, 128)
        "b2": params["b2"],                                 # (1, 128)
        "wc": params["wc"],                                 # (4, 3)  -> SMEM
        "bc": params["bc"],                                 # (1, 4)  -> SMEM
    }


def reference_forward(x, budgets, learning_curves, params):
    """Pure-JAX reference mirroring the PyTorch forward (train-mode BN, b1 kept)."""
    xb = jnp.concatenate([x, budgets[:, None]], axis=1)
    h = xb @ params["w1"] + params["b1"]
    mu = h.mean(0, keepdims=True)
    var = ((h - mu) ** 2).mean(0, keepdims=True)
    h = (h - mu) / jnp.sqrt(var + BN_EPS) * params["gamma"] + params["beta"]
    h = jnp.where(h > 0, h, LEAKY_SLOPE * h)
    lc = learning_curves
    l_out = lc.shape[1] - CNN_KERNEL + 1
    windows = jnp.stack([lc[:, k:k + l_out] for k in range(CNN_KERNEL)], -1)
    conv = jnp.einsum("blk,ck->blc", windows, params["wc"]) + params["bc"][0]
    lc_feat = conv.max(axis=1)                                       # (B, 4)
    y = h @ params["w2a"] + lc_feat @ params["w2b"] + params["b2"]
    return jnp.where(y > 0, y, LEAKY_SLOPE * y)


if __name__ == "__main__":
    INPUT_SIZE = 8      # fc1 input size (x features + 1 budget)
    SEQ_LEN = 16        # learning-curve length

    key = jax.random.PRNGKey(0)
    k_p, k_data = jax.random.split(key)
    params = init_params(k_p, INPUT_SIZE)
    kparams = prepare_params(params)

    def run_case(batch, tile_b):
        kx, kb, kl = jax.random.split(jax.random.fold_in(k_data, batch), 3)
        x = jax.random.normal(kx, (batch, INPUT_SIZE - 1), jnp.float32)
        budgets = jax.random.uniform(kb, (batch,), jnp.float32)
        lcs = jax.random.uniform(kl, (batch, SEQ_LEN), jnp.float32)

        out = neural_feature_extractor(x, budgets, lcs, kparams, tile_b=tile_b)
        out = jax.block_until_ready(out)

        ref = reference_forward(x, budgets, lcs, params)
        assert out.shape == (batch, 128), out.shape
        assert jnp.allclose(out, ref, atol=1e-4, rtol=1e-4), \
            float(jnp.max(jnp.abs(out - ref)))

    run_case(batch=8, tile_b=512)   # small batch -> fused single-tile kernel
    run_case(batch=20, tile_b=8)    # multi-tile grid + BN-stats pass + padding

    print("KERNEL_OK")
</pallas_src>

<mosaic_0001>
module attributes {stable_mosaic.version = 11 : i64} {
  func.func @_fwd_fused_kernel(%arg0: memref<8x7xf32, #tpu.memory_space<vmem>>, %arg1: memref<8x1xf32, #tpu.memory_space<vmem>>, %arg2: memref<8x16xf32, #tpu.memory_space<vmem>>, %arg3: memref<7x128xf32, #tpu.memory_space<vmem>>, %arg4: memref<1x128xf32, #tpu.memory_space<vmem>>, %arg5: memref<1x128xf32, #tpu.memory_space<vmem>>, %arg6: memref<1x128xf32, #tpu.memory_space<vmem>>, %arg7: memref<128x128xf32, #tpu.memory_space<vmem>>, %arg8: memref<4x128xf32, #tpu.memory_space<vmem>>, %arg9: memref<1x128xf32, #tpu.memory_space<vmem>>, %arg10: memref<4x3xf32, #tpu.memory_space<smem>>, %arg11: memref<1x4xf32, #tpu.memory_space<smem>>, %arg12: memref<8x128xf32, #tpu.memory_space<vmem>>) attributes {dimension_semantics = [], scalar_prefetch = 0 : i64, scratch_operands = 0 : i64, tpu.core_type = #tpu.core_type<tc>} {
    %c0 = arith.constant 0 : index
    %c0_0 = arith.constant 0 : index
    %0 = vector.load %arg0[%c0, %c0_0] : memref<8x7xf32, #tpu.memory_space<vmem>>, vector<8x7xf32>
    %c0_1 = arith.constant 0 : index
    %c0_2 = arith.constant 0 : index
    %1 = vector.load %arg3[%c0_1, %c0_2] : memref<7x128xf32, #tpu.memory_space<vmem>>, vector<7x128xf32>
    %cst = arith.constant dense<0.000000e+00> : vector<8x128xf32>
    %2 = tpu.matmul %0, %1, %cst {dimension_numbers = #tpu.dot_dimension_numbers<[1], [0], [0], [1], [0, 0, 1, 1], [], []>} : vector<8x7xf32>, vector<7x128xf32>, vector<8x128xf32> -> vector<8x128xf32>
    %c0_3 = arith.constant 0 : index
    %c0_4 = arith.constant 0 : index
    %3 = vector.load %arg1[%c0_3, %c0_4] : memref<8x1xf32, #tpu.memory_space<vmem>>, vector<8x1xf32>
    %c0_5 = arith.constant 0 : index
    %c0_6 = arith.constant 0 : index
    %4 = vector.load %arg4[%c0_5, %c0_6] : memref<1x128xf32, #tpu.memory_space<vmem>>, vector<1x128xf32>
    %5 = vector.broadcast %3 : vector<8x1xf32> to vector<8x128xf32>
    %6 = vector.broadcast %4 : vector<1x128xf32> to vector<8x128xf32>
    %7 = arith.mulf %5, %6 : vector<8x128xf32>
    %8 = arith.addf %2, %7 : vector<8x128xf32>
    %cst_7 = arith.constant dense<0.000000e+00> : vector<128xf32>
    %9 = vector.multi_reduction <add>, %8, %cst_7 [0] : vector<8x128xf32> to vector<128xf32>
    %10 = vector.shape_cast %9 : vector<128xf32> to vector<1x128xf32>
    %cst_8 = arith.constant 1.250000e-01 : f32
    %11 = vector.broadcast %cst_8 : f32 to vector<1x128xf32>
    %12 = arith.mulf %10, %11 : vector<1x128xf32>
    %13 = arith.mulf %8, %8 : vector<8x128xf32>
    %cst_9 = arith.constant dense<0.000000e+00> : vector<128xf32>
    %14 = vector.multi_reduction <add>, %13, %cst_9 [0] : vector<8x128xf32> to vector<128xf32>
    %15 = vector.shape_cast %14 : vector<128xf32> to vector<1x128xf32>
    %cst_10 = arith.constant 1.250000e-01 : f32
    %16 = vector.broadcast %cst_10 : f32 to vector<1x128xf32>
    %17 = arith.mulf %15, %16 : vector<1x128xf32>
    %18 = arith.mulf %12, %12 : vector<1x128xf32>
    %19 = arith.subf %17, %18 : vector<1x128xf32>
    %cst_11 = arith.constant 0.000000e+00 : f32
    %20 = vector.broadcast %cst_11 : f32 to vector<1x128xf32>
    %21 = arith.maximumf %19, %20 : vector<1x128xf32>
    %cst_12 = arith.constant 9.99999974E-6 : f32
    %22 = vector.broadcast %cst_12 : f32 to vector<1x128xf32>
    %23 = arith.addf %21, %22 : vector<1x128xf32>
    %24 = math.rsqrt %23 : vector<1x128xf32>
    %c0_13 = arith.constant 0 : index
    %c0_14 = arith.constant 0 : index
    %25 = vector.load %arg5[%c0_13, %c0_14] : memref<1x128xf32, #tpu.memory_space<vmem>>, vector<1x128xf32>
    %26 = arith.mulf %24, %25 : vector<1x128xf32>
    %c0_15 = arith.constant 0 : index
    %c0_16 = arith.constant 0 : index
    %27 = vector.load %arg6[%c0_15, %c0_16] : memref<1x128xf32, #tpu.memory_space<vmem>>, vector<1x128xf32>
    %28 = arith.mulf %12, %26 : vector<1x128xf32>
    %29 = arith.subf %27, %28 : vector<1x128xf32>
    %30 = vector.broadcast %26 : vector<1x128xf32> to vector<8x128xf32>
    %31 = arith.mulf %8, %30 : vector<8x128xf32>
    %32 = vector.broadcast %29 : vector<1x128xf32> to vector<8x128xf32>
    %33 = arith.addf %31, %32 : vector<8x128xf32>
    %cst_17 = arith.constant 0.000000e+00 : f32
    %34 = vector.broadcast %cst_17 : f32 to vector<8x128xf32>
    %35 = arith.cmpf ogt, %33, %34 : vector<8x128xf32>
    %cst_18 = arith.constant 0.00999999977 : f32
    %36 = vector.broadcast %cst_18 : f32 to vector<8x128xf32>
    %37 = arith.mulf %36, %33 : vector<8x128xf32>
    %38 = arith.select %35, %33, %37 : vector<8x128xi1>, vector<8x128xf32>
    %c0_19 = arith.constant 0 : index
    %c0_20 = arith.constant 0 : index
    %39 = vector.load %arg7[%c0_19, %c0_20] : memref<128x128xf32, #tpu.memory_space<vmem>>, vector<128x128xf32>
    %cst_21 = arith.constant dense<0.000000e+00> : vector<8x128xf32>
    %40 = tpu.matmul %38, %39, %cst_21 {dimension_numbers = #tpu.dot_dimension_numbers<[1], [0], [0], [1], [0, 0, 1, 1], [], []>} : vector<8x128xf32>, vector<128x128xf32>, vector<8x128xf32> -> vector<8x128xf32>
    %c0_22 = arith.constant 0 : index
    %c0_23 = arith.constant 0 : index
    %41 = vector.load %arg9[%c0_22, %c0_23] : memref<1x128xf32, #tpu.memory_space<vmem>>, vector<1x128xf32>
    %42 = vector.broadcast %41 : vector<1x128xf32> to vector<8x128xf32>
    %43 = arith.addf %40, %42 : vector<8x128xf32>
    %c0_24 = arith.constant 0 : index
    %c0_25 = arith.constant 0 : index
    %44 = vector.load %arg2[%c0_24, %c0_25] : memref<8x16xf32, #tpu.memory_space<vmem>>, vector<8x16xf32>
    %45 = vector.extract_strided_slice %44 {offsets = [0, 0], sizes = [8, 14], strides = [1, 1]} : vector<8x16xf32> to vector<8x14xf32>
    %46 = vector.extract_strided_slice %44 {offsets = [0, 1], sizes = [8, 14], strides = [1, 1]} : vector<8x16xf32> to vector<8x14xf32>
    %47 = vector.extract_strided_slice %44 {offsets = [0, 2], sizes = [8, 14], strides = [1, 1]} : vector<8x16xf32> to vector<8x14xf32>
    %c0_26 = arith.constant 0 : index
    %c0_27 = arith.constant 0 : index
    %48 = memref.load %arg10[%c0_26, %c0_27] : memref<4x3xf32, #tpu.memory_space<smem>>
    %49 = vector.broadcast %48 : f32 to vector<8x14xf32>
    %50 = arith.mulf %45, %49 : vector<8x14xf32>
    %c0_28 = arith.constant 0 : index
    %c1 = arith.constant 1 : index
    %51 = memref.load %arg10[%c0_28, %c1] : memref<4x3xf32, #tpu.memory_space<smem>>
    %52 = vector.broadcast %51 : f32 to vector<8x14xf32>
    %53 = arith.mulf %46, %52 : vector<8x14xf32>
    %54 = arith.addf %50, %53 : vector<8x14xf32>
    %c0_29 = arith.constant 0 : index
    %c2 = arith.constant 2 : index
    %55 = memref.load %arg10[%c0_29, %c2] : memref<4x3xf32, #tpu.memory_space<smem>>
    %56 = vector.broadcast %55 : f32 to vector<8x14xf32>
    %57 = arith.mulf %47, %56 : vector<8x14xf32>
    %58 = arith.addf %54, %57 : vector<8x14xf32>
    %cst_30 = arith.constant dense<0xFF800000> : vector<8xf32>
    %59 = vector.multi_reduction <maximumf>, %58, %cst_30 [1] : vector<8x14xf32> to vector<8xf32>
    %60 = vector.shape_cast %59 : vector<8xf32> to vector<8x1xf32>
    %c0_31 = arith.constant 0 : index
    %c0_32 = arith.constant 0 : index
    %61 = memref.load %arg11[%c0_31, %c0_32] : memref<1x4xf32, #tpu.memory_space<smem>>
    %62 = vector.broadcast %61 : f32 to vector<8x1xf32>
    %63 = arith.addf %60, %62 : vector<8x1xf32>
    %c0_33 = arith.constant 0 : index
    %c0_34 = arith.constant 0 : index
    %64 = vector.load %arg8[%c0_33, %c0_34] : memref<4x128xf32, #tpu.memory_space<vmem>>, vector<1x128xf32>
    %65 = vector.broadcast %63 : vector<8x1xf32> to vector<8x128xf32>
    %66 = vector.broadcast %64 : vector<1x128xf32> to vector<8x128xf32>
    %67 = arith.mulf %65, %66 : vector<8x128xf32>
    %68 = arith.addf %43, %67 : vector<8x128xf32>
    %c1_35 = arith.constant 1 : index
    %c0_36 = arith.constant 0 : index
    %69 = memref.load %arg10[%c1_35, %c0_36] : memref<4x3xf32, #tpu.memory_space<smem>>
    %70 = vector.broadcast %69 : f32 to vector<8x14xf32>
    %71 = arith.mulf %45, %70 : vector<8x14xf32>
    %c1_37 = arith.constant 1 : index
    %c1_38 = arith.constant 1 : index
    %72 = memref.load %arg10[%c1_37, %c1_38] : memref<4x3xf32, #tpu.memory_space<smem>>
    %73 = vector.broadcast %72 : f32 to vector<8x14xf32>
    %74 = arith.mulf %46, %73 : vector<8x14xf32>
    %75 = arith.addf %71, %74 : vector<8x14xf32>
    %c1_39 = arith.constant 1 : index
    %c2_40 = arith.constant 2 : index
    %76 = memref.load %arg10[%c1_39, %c2_40] : memref<4x3xf32, #tpu.memory_space<smem>>
    %77 = vector.broadcast %76 : f32 to vector<8x14xf32>
    %78 = arith.mulf %47, %77 : vector<8x14xf32>
    %79 = arith.addf %75, %78 : vector<8x14xf32>
    %cst_41 = arith.constant dense<0xFF800000> : vector<8xf32>
    %80 = vector.multi_reduction <maximumf>, %79, %cst_41 [1] : vector<8x14xf32> to vector<8xf32>
    %81 = vector.shape_cast %80 : vector<8xf32> to vector<8x1xf32>
    %c0_42 = arith.constant 0 : index
    %c1_43 = arith.constant 1 : index
    %82 = memref.load %arg11[%c0_42, %c1_43] : memref<1x4xf32, #tpu.memory_space<smem>>
    %83 = vector.broadcast %82 : f32 to vector<8x1xf32>
    %84 = arith.addf %81, %83 : vector<8x1xf32>
    %c1_44 = arith.constant 1 : index
    %c0_45 = arith.constant 0 : index
    %85 = vector.load %arg8[%c1_44, %c0_45] : memref<4x128xf32, #tpu.memory_space<vmem>>, vector<1x128xf32>
    %86 = vector.broadcast %84 : vector<8x1xf32> to vector<8x128xf32>
    %87 = vector.broadcast %85 : vector<1x128xf32> to vector<8x128xf32>
    %88 = arith.mulf %86, %87 : vector<8x128xf32>
    %89 = arith.addf %68, %88 : vector<8x128xf32>
    %c2_46 = arith.constant 2 : index
    %c0_47 = arith.constant 0 : index
    %90 = memref.load %arg10[%c2_46, %c0_47] : memref<4x3xf32, #tpu.memory_space<smem>>
    %91 = vector.broadcast %90 : f32 to vector<8x14xf32>
    %92 = arith.mulf %45, %91 : vector<8x14xf32>
    %c2_48 = arith.constant 2 : index
    %c1_49 = arith.constant 1 : index
    %93 = memref.load %arg10[%c2_48, %c1_49] : memref<4x3xf32, #tpu.memory_space<smem>>
    %94 = vector.broadcast %93 : f32 to vector<8x14xf32>
    %95 = arith.mulf %46, %94 : vector<8x14xf32>
    %96 = arith.addf %92, %95 : vector<8x14xf32>
    %c2_50 = arith.constant 2 : index
    %c2_51 = arith.constant 2 : index
    %97 = memref.load %arg10[%c2_50, %c2_51] : memref<4x3xf32, #tpu.memory_space<smem>>
    %98 = vector.broadcast %97 : f32 to vector<8x14xf32>
    %99 = arith.mulf %47, %98 : vector<8x14xf32>
    %100 = arith.addf %96, %99 : vector<8x14xf32>
    %cst_52 = arith.constant dense<0xFF800000> : vector<8xf32>
    %101 = vector.multi_reduction <maximumf>, %100, %cst_52 [1] : vector<8x14xf32> to vector<8xf32>
    %102 = vector.shape_cast %101 : vector<8xf32> to vector<8x1xf32>
    %c0_53 = arith.constant 0 : index
    %c2_54 = arith.constant 2 : index
    %103 = memref.load %arg11[%c0_53, %c2_54] : memref<1x4xf32, #tpu.memory_space<smem>>
    %104 = vector.broadcast %103 : f32 to vector<8x1xf32>
    %105 = arith.addf %102, %104 : vector<8x1xf32>
    %c2_55 = arith.constant 2 : index
    %c0_56 = arith.constant 0 : index
    %106 = vector.load %arg8[%c2_55, %c0_56] : memref<4x128xf32, #tpu.memory_space<vmem>>, vector<1x128xf32>
    %107 = vector.broadcast %105 : vector<8x1xf32> to vector<8x128xf32>
    %108 = vector.broadcast %106 : vector<1x128xf32> to vector<8x128xf32>
    %109 = arith.mulf %107, %108 : vector<8x128xf32>
    %110 = arith.addf %89, %109 : vector<8x128xf32>
    %c3 = arith.constant 3 : index
    %c0_57 = arith.constant 0 : index
    %111 = memref.load %arg10[%c3, %c0_57] : memref<4x3xf32, #tpu.memory_space<smem>>
    %112 = vector.broadcast %111 : f32 to vector<8x14xf32>
    %113 = arith.mulf %45, %112 : vector<8x14xf32>
    %c3_58 = arith.constant 3 : index
    %c1_59 = arith.constant 1 : index
    %114 = memref.load %arg10[%c3_58, %c1_59] : memref<4x3xf32, #tpu.memory_space<smem>>
    %115 = vector.broadcast %114 : f32 to vector<8x14xf32>
    %116 = arith.mulf %46, %115 : vector<8x14xf32>
    %117 = arith.addf %113, %116 : vector<8x14xf32>
    %c3_60 = arith.constant 3 : index
    %c2_61 = arith.constant 2 : index
    %118 = memref.load %arg10[%c3_60, %c2_61] : memref<4x3xf32, #tpu.memory_space<smem>>
    %119 = vector.broadcast %118 : f32 to vector<8x14xf32>
    %120 = arith.mulf %47, %119 : vector<8x14xf32>
    %121 = arith.addf %117, %120 : vector<8x14xf32>
    %cst_62 = arith.constant dense<0xFF800000> : vector<8xf32>
    %122 = vector.multi_reduction <maximumf>, %121, %cst_62 [1] : vector<8x14xf32> to vector<8xf32>
    %123 = vector.shape_cast %122 : vector<8xf32> to vector<8x1xf32>
    %c0_63 = arith.constant 0 : index
    %c3_64 = arith.constant 3 : index
    %124 = memref.load %arg11[%c0_63, %c3_64] : memref<1x4xf32, #tpu.memory_space<smem>>
    %125 = vector.broadcast %124 : f32 to vector<8x1xf32>
    %126 = arith.addf %123, %125 : vector<8x1xf32>
    %c3_65 = arith.constant 3 : index
    %c0_66 = arith.constant 0 : index
    %127 = vector.load %arg8[%c3_65, %c0_66] : memref<4x128xf32, #tpu.memory_space<vmem>>, vector<1x128xf32>
    %128 = vector.broadcast %126 : vector<8x1xf32> to vector<8x128xf32>
    %129 = vector.broadcast %127 : vector<1x128xf32> to vector<8x128xf32>
    %130 = arith.mulf %128, %129 : vector<8x128xf32>
    %131 = arith.addf %110, %130 : vector<8x128xf32>
    %cst_67 = arith.constant 0.000000e+00 : f32
    %132 = vector.broadcast %cst_67 : f32 to vector<8x128xf32>
    %133 = arith.cmpf ogt, %131, %132 : vector<8x128xf32>
    %cst_68 = arith.constant 0.00999999977 : f32
    %134 = vector.broadcast %cst_68 : f32 to vector<8x128xf32>
    %135 = arith.mulf %134, %131 : vector<8x128xf32>
    %136 = arith.select %133, %131, %135 : vector<8x128xi1>, vector<8x128xf32>
    %c0_69 = arith.constant 0 : index
    %c0_70 = arith.constant 0 : index
    %137 = vector.load %arg12[%c0_69, %c0_70] : memref<8x128xf32, #tpu.memory_space<vmem>>, vector<8x128xf32>
    tpu.vector_store %arg12[%c0_69, %c0_70], %136 {strides = array<i32>} : memref<8x128xf32, #tpu.memory_space<vmem>>, vector<8x128xf32>,
    return
  }
}

</mosaic_0001>

<llo_original>
// kernel: tpu_custom_call.1
$region0: #{tpu_custom_call.1}
  #allocation0 [shape = 'u32[]', space=smem, size = 0x4, offset = 0x4, fixed_abs, tag = 'smem constant byte address 0x4 - core index']
  #allocation1 [shape = 'u32[144,128]{1,0:T(1,128)}', space=vmem, size = 0x12000, scoped, tag = 'internal scratch']
  %s0 = inlined_call_operand.vmem [shape: f32[8,7], index: 0, kind: input, shape index: {}]
  %s1 = inlined_call_operand.vmem [shape: f32[8,1], index: 1, kind: input, shape index: {}]
  %s2 = inlined_call_operand.vmem [shape: f32[8,16], index: 2, kind: input, shape index: {}]
  %s3 = inlined_call_operand.hbm [shape: f32[7,128], index: 3, kind: input, shape index: {}]
  %s4 = inlined_call_operand.hbm [shape: f32[1,128], index: 4, kind: input, shape index: {}]
  %s5 = inlined_call_operand.vmem [shape: f32[1,128], index: 5, kind: input, shape index: {}]
  %s6 = inlined_call_operand.vmem [shape: f32[1,128], index: 6, kind: input, shape index: {}]
  %s7 = inlined_call_operand.hbm [shape: f32[128,128], index: 7, kind: input, shape index: {}]
  %s8 = inlined_call_operand.vmem [shape: f32[4,128], index: 8, kind: input, shape index: {}]
  %s9 = inlined_call_operand.vmem [shape: f32[1,128], index: 9, kind: input, shape index: {}]
  %s10 = inlined_call_operand.vmem [shape: f32[4,3], index: 10, kind: input, shape index: {}]
  %s11 = inlined_call_operand.vmem [shape: f32[1,4], index: 11, kind: input, shape index: {}]
  %s12 = inlined_call_operand.hbm [shape: f32[8,128], index: 12, kind: output, shape index: {}]
  %s13 = sld [smem:[#allocation0]]
  $region78: #{tpu_custom_call.1} parent=0
    _
  %s15 = ssub.s32 1, %s13
  %s16 = scalar_select 0, %s15, %s13
  $region1: #{tpu_custom_call.1} parent=0
    #allocation2 [shape = 'u8[4096]{0}', space=vmem, size = 0x1000, scoped, tag = 'input window, operand 3, single buffered']
    #allocation3 [shape = 's32[1]{0}', space=sflag, size = 0x4, scoped, tag = 'scoped memory for tpu_custom_call.1']
    #allocation4 [shape = 's32[1]{0}', space=sflag, size = 0x4, scoped, tag = 'scoped memory for tpu_custom_call.1']
    #allocation5 [shape = 's32[1]{0}', space=sflag, size = 0x4, scoped, tag = 'scoped memory for tpu_custom_call.1']
    #allocation6 [shape = 'u8[512]{0}', space=vmem, size = 0x400, scoped, tag = 'input window, operand 4, single buffered']
    #allocation7 [shape = 's32[1]{0}', space=sflag, size = 0x4, scoped, tag = 'scoped memory for tpu_custom_call.1']
    #allocation8 [shape = 'u8[65536]{0}', space=vmem, size = 0x10000, scoped, tag = 'input window, operand 7, single buffered']
    #allocation9 [shape = 'u8[2048]{0}', space=smem, size = 0x800, scoped, tag = 'input window, operand 10, single buffered']
    #allocation10 [shape = 'u8[512]{0}', space=smem, size = 0x200, scoped, tag = 'input window, operand 11, single buffered']
    #allocation11 [shape = 's32[1]{0}', space=sflag, size = 0x4, scoped, tag = 'scoped memory for tpu_custom_call.1']
    #allocation12 [shape = 'u8[4096]{0}', space=vmem, size = 0x1000, scoped, tag = 'output window, operand 0, single buffered']
    %17 = vsyncpa [#allocation3], 0
    %18 = vsyncpa [#allocation7], 0
    %19 = vsyncpa [#allocation5], 0
    %20 = vsyncpa [#allocation11], 0
    %21 = vsyncpa [#allocation4], 0
    // Predicated region
    $region2: #{tpu_custom_call.1} parent=1 // pred_check
      _
    $region3: #{tpu_custom_call.1} parent=1 // pred_check_branch
      %23 = sbr.rel (0) target = $region5
    $region4: #{tpu_custom_call.1} parent=1 // pred_region
      _
    $region5: #{tpu_custom_call.1} parent=1 // pred_fallthru
      _
    // Predicated region
    $region6: #{tpu_custom_call.1} parent=1 // pred_check
      _
    $region7: #{tpu_custom_call.1} parent=1 // pred_check_branch
      %25 = sbr.rel (0) target = $region9
    $region8: #{tpu_custom_call.1} parent=1 // pred_region
      _
    $region9: #{tpu_custom_call.1} parent=1 // pred_fallthru
      _
    // Predicated region
    $region10: #{tpu_custom_call.1} parent=1 // pred_check
      _
    $region11: #{tpu_custom_call.1} parent=1 // pred_check_branch
      %27 = sbr.rel (0) target = $region13
    $region12: #{tpu_custom_call.1} parent=1 // pred_region
      _
    $region13: #{tpu_custom_call.1} parent=1 // pred_fallthru
      _
    // Predicated region
    $region14: #{tpu_custom_call.1} parent=1 // pred_check
      _
    $region15: #{tpu_custom_call.1} parent=1 // pred_check_branch
      %29 = sbr.rel (0) target = $region17
    $region16: #{tpu_custom_call.1} parent=1 // pred_region
      %s31 = ssub.s32 128, 128
      %32 = vsyncadd [#allocation3], %s31
      %s34 = sshll.u32 [#allocation2], 4
      %s35 = int_to_ptr.vmem [resolvable:$true] %s34
      %37 = dma.hbm_to_vmem [thread:$0]  %s3, 128, %s35, [#allocation3]
    $region17: #{tpu_custom_call.1} parent=1 // pred_fallthru
      _
    // Predicated region
    $region18: #{tpu_custom_call.1} parent=1 // pred_check
      _
    $region19: #{tpu_custom_call.1} parent=1 // pred_check_branch
      %39 = sbr.rel (0) target = $region21
    $region20: #{tpu_custom_call.1} parent=1 // pred_region
      %s41 = ssub.s32 16, 16
      %42 = vsyncadd [#allocation7], %s41
      %s44 = sshll.u32 [#allocation6], 4
      %s45 = int_to_ptr.vmem [resolvable:$true] %s44
      %47 = dma.hbm_to_vmem [thread:$0]  %s4, 16, %s45, [#allocation7]
    $region21: #{tpu_custom_call.1} parent=1 // pred_fallthru
      _
    // Predicated region
    $region22: #{tpu_custom_call.1} parent=1 // pred_check
      _
    $region23: #{tpu_custom_call.1} parent=1 // pred_check_branch
      %49 = sbr.rel (0) target = $region25
    $region24: #{tpu_custom_call.1} parent=1 // pred_region
      _
    $region25: #{tpu_custom_call.1} parent=1 // pred_fallthru
      _
    // Predicated region
    $region26: #{tpu_custom_call.1} parent=1 // pred_check
      _
    $region27: #{tpu_custom_call.1} parent=1 // pred_check_branch
      %51 = sbr.rel (0) target = $region29
    $region28: #{tpu_custom_call.1} parent=1 // pred_region
      _
    $region29: #{tpu_custom_call.1} parent=1 // pred_fallthru
      _
    // Predicated region
    $region30: #{tpu_custom_call.1} parent=1 // pred_check
      _
    $region31: #{tpu_custom_call.1} parent=1 // pred_check_branch
      %53 = sbr.rel (0) target = $region33
    $region32: #{tpu_custom_call.1} parent=1 // pred_region
      %s55 = ssub.s32 2048, 2048
      %56 = vsyncadd [#allocation7], %s55
      %s57 = sshll.u32 [#allocation8], 4
      %s58 = int_to_ptr.vmem [resolvable:$true] %s57
      %63 = dma.hbm_to_vmem [thread:$0]  %s7, 2048, %s58, [#allocation7], 128, 128, 8
    $region33: #{tpu_custom_call.1} parent=1 // pred_fallthru
      _
    // Predicated region
    $region34: #{tpu_custom_call.1} parent=1 // pred_check
      _
    $region35: #{tpu_custom_call.1} parent=1 // pred_check_branch
      %65 = sbr.rel (0) target = $region37
    $region36: #{tpu_custom_call.1} parent=1 // pred_region
      _
    $region37: #{tpu_custom_call.1} parent=1 // pred_fallthru
      _
    // Predicated region
    $region38: #{tpu_custom_call.1} parent=1 // pred_check
      _
    $region39: #{tpu_custom_call.1} parent=1 // pred_check_branch
      %67 = sbr.rel (0) target = $region41
    $region40: #{tpu_custom_call.1} parent=1 // pred_region
      _
    $region41: #{tpu_custom_call.1} parent=1 // pred_fallthru
      _
    // Predicated region
    $region42: #{tpu_custom_call.1} parent=1 // pred_check
      _
    $region43: #{tpu_custom_call.1} parent=1 // pred_check_branch
      %69 = sbr.rel (0) target = $region45
    $region44: #{tpu_custom_call.1} parent=1 // pred_region
      %s71 = ssub.s32 64, 64
      %72 = vsyncadd [#allocation5], %s71
      %s74 = sshll.u32 %s10, 4
      %s75 = int_to_ptr.vmem [resolvable:$true] %s74
      %77 = dma.vmem_to_smem %s75, 64, [#allocation9], [#allocation5]
    $region45: #{tpu_custom_call.1} parent=1 // pred_fallthru
      _
    // Predicated region
    $region46: #{tpu_custom_call.1} parent=1 // pred_check
      _
    $region47: #{tpu_custom_call.1} parent=1 // pred_check_branch
      %79 = sbr.rel (0) target = $region49
    $region48: #{tpu_custom_call.1} parent=1 // pred_region
      %s81 = ssub.s32 16, 16
      %82 = vsyncadd [#allocation11], %s81
      %s84 = sshll.u32 %s11, 4
      %s85 = int_to_ptr.vmem [resolvable:$true] %s84
      %87 = dma.vmem_to_smem %s85, 16, [#allocation10], [#allocation11]
    $region49: #{tpu_custom_call.1} parent=1 // pred_fallthru
      _
    // Predicated region
    $region50: #{tpu_custom_call.1} parent=1 // pred_check
      _
    $region51: #{tpu_custom_call.1} parent=1 // pred_check_branch
      %89 = sbr.rel (0) target = $region53
    $region52: #{tpu_custom_call.1} parent=1 // pred_region
      %90 = dma.done [#allocation3], 128
    $region53: #{tpu_custom_call.1} parent=1 // pred_fallthru
      _
    // Predicated region
    $region54: #{tpu_custom_call.1} parent=1 // pred_check
      _
    $region55: #{tpu_custom_call.1} parent=1 // pred_check_branch
      %92 = sbr.rel (0) target = $region57
    $region56: #{tpu_custom_call.1} parent=1 // pred_region
      %93 = dma.done [#allocation7], 16
    $region57: #{tpu_custom_call.1} parent=1 // pred_fallthru
      _
    // Predicated region
    $region58: #{tpu_custom_call.1} parent=1 // pred_check
      _
    $region59: #{tpu_custom_call.1} parent=1 // pred_check_branch
      %95 = sbr.rel (0) target = $region61
    $region60: #{tpu_custom_call.1} parent=1 // pred_region
      %96 = dma.done [#allocation7], 2048
    $region61: #{tpu_custom_call.1} parent=1 // pred_fallthru
      _
    // Predicated region
    $region62: #{tpu_custom_call.1} parent=1 // pred_check
      _
    $region63: #{tpu_custom_call.1} parent=1 // pred_check_branch
      %98 = sbr.rel (0) target = $region65
    $region64: #{tpu_custom_call.1} parent=1 // pred_region
      %99 = dma.done [#allocation5], 64
    $region65: #{tpu_custom_call.1} parent=1 // pred_fallthru
      _
    // Predicated region
    $region66: #{tpu_custom_call.1} parent=1 // pred_check
      _
    $region67: #{tpu_custom_call.1} parent=1 // pred_check_branch
      %101 = sbr.rel (0) target = $region69
    $region68: #{tpu_custom_call.1} parent=1 // pred_region
      %102 = dma.done [#allocation11], 16
    $region69: #{tpu_custom_call.1} parent=1 // pred_fallthru
      _
    %103 = sfence
    %v104 = vld [vmem:[%s0] sm:$0xff]
    %v105 = vld [vmem:[#allocation2] sm:$0x7f]
    %v106 = vld [vmem:[%s1] sm:$0xff]
    %v107 = vld [vmem:[#allocation6] sm:$0x1]
    %109 = vset.pattern.permute.xlu0 0
    %110 = vperm.xlu0 %109, %v106
    %v111 = vpop.permute.xlu0 %110
    %v114 = vlaneseq
    %v115 = vshrl.u32 %v114, 7
    %v116 = vsub.s32 0, %v115
    %v117 = vrot.slane %v107, %v116
    %v119 = vmul.f32 %v111, %v117
    %vm120 = vcmask 56320
    %v122 = vsel %vm120, %v104, 0
    %vm124 = vcmask 1046528
    %v126 = vsel %vm124, %v105, 0
    %128 = vmatprep.subr.mxu0 0.0
    %129 = vmatpush1.msra.mxu0 %v126
    %130 = vmatprep.subr.mxu0 0.0
    %131 = vmatpush1.msra.mxu0 0.0
    %132 = vmatprep.subr.mxu0 0.0
    %133 = vmatpush1.msra.mxu0 0.0
    %134 = vmatprep.subr.mxu0 0.0
    %135 = vmatpush1.msra.mxu0 0.0
    %136 = vmatprep.subr.mxu0 0.0
    %137 = vmatpush1.msra.mxu0 0.0
    %138 = vmatprep.subr.mxu0 0.0
    %139 = vmatpush1.msra.mxu0 0.0
    %140 = vmatprep.subr.mxu0 0.0
    %141 = vmatpush1.msra.mxu0 0.0
    %142 = vmatprep.subr.mxu0 0.0
    %143 = vmatpush1.msra.mxu0 0.0
    %144 = vmatprep.subr.mxu0 0.0
    %145 = vmatpush1.msra.mxu0 0.0
    %146 = vmatprep.subr.mxu0 0.0
    %147 = vmatpush1.msra.mxu0 0.0
    %148 = vmatprep.subr.mxu0 0.0
    %149 = vmatpush1.msra.mxu0 0.0
    %150 = vmatprep.subr.mxu0 0.0
    %151 = vmatpush1.msra.mxu0 0.0
    %152 = vmatprep.subr.mxu0 0.0
    %153 = vmatpush1.msra.mxu0 0.0
    %154 = vmatprep.subr.mxu0 0.0
    %155 = vmatpush1.msra.mxu0 0.0
    %156 = vmatprep.subr.mxu0 0.0
    %157 = vmatpush1.msra.mxu0 0.0
    %158 = vmatprep.subr.mxu0 0.0
    %159 = vmatpush1.msra.mxu0 0.0
    %160 = vmatprep.subr.mxu0 0.0
    %161 = vmatpush1.msra.mxu0 0.0
    %162 = vmatprep.subr.mxu0 0.0
    %163 = vmatpush1.msra.mxu0 0.0
    %164 = vmatprep.subr.mxu0 0.0
    %165 = vmatpush1.msra.mxu0 0.0
    %166 = vmatprep.subr.mxu0 0.0
    %167 = vmatpush1.msra.mxu0 0.0
    %168 = vmatprep.subr.mxu0 0.0
    %169 = vmatpush1.msra.mxu0 0.0
    %170 = vmatprep.subr.mxu0 0.0
    %171 = vmatpush1.msra.mxu0 0.0
    %172 = vmatprep.subr.mxu0 0.0
    %173 = vmatpush1.msra.mxu0 0.0
    %174 = vmatprep.subr.mxu0 0.0
    %175 = vmatpush1.msra.mxu0 0.0
    %176 = vmatprep.subr.mxu0 0.0
    %177 = vmatpush1.msra.mxu0 0.0
    %178 = vmatprep.subr.mxu0 0.0
    %179 = vmatpush1.msra.mxu0 0.0
    %180 = vmatprep.subr.mxu0 0.0
    %181 = vmatpush1.msra.mxu0 0.0
    %182 = vmatprep.subr.mxu0 0.0
    %183 = vmatpush1.msra.mxu0 0.0
    %184 = vmatprep.subr.mxu0 0.0
    %185 = vmatpush1.msra.mxu0 0.0
    %186 = vmatprep.subr.mxu0 0.0
    %187 = vmatpush1.msra.mxu0 0.0
    %188 = vmatprep.subr.mxu0 0.0
    %189 = vmatpush1.msra.mxu0 0.0
    %190 = vmatprep.subr.mxu0 0.0
    %191 = vmatpush1.msra.mxu0 0.0
    %192 = vmatprep.mubr.f32.mxu0 0.0
    %193 = vmatmul.mubr.f32.gmra.mrb[0].mxu0 %v122
    %v194 = vpop.f32.mrb[0].mxu0
    %v195 = vadd.f32 %v119, %v194
    %v196 = vpop.f32.mrb[0].mxu0
    %197 = vdwg.mxu0
    %v198 = vrot.slane %v195, 4
    %v199 = vadd.f32 %v195, %v198
    %v200 = vrot.slane %v199, 2
    %v201 = vadd.f32 %v199, %v200
    %v202 = vrot.slane %v201, 1
    %v203 = vadd.f32 %v201, %v202
    %v204 = vmul.f32 %v203, 0.125
    %v205 = vmul.f32 %v195, %v195
    %v206 = vrot.slane %v205, 4
    %v207 = vadd.f32 %v205, %v206
    %v208 = vrot.slane %v207, 2
    %v209 = vadd.f32 %v207, %v208
    %v210 = vrot.slane %v209, 1
    %v211 = vadd.f32 %v209, %v210
    %v212 = vmul.f32 %v211, 0.125
    %v213 = vmul.f32 %v204, %v204
    %v214 = vsub.f32 %v212, %v213
    %v215 = vmax.f32 %v214, 0.0
    %v216 = vadd.f32 %v215, 1e-05
    %v217 = vrsqrt.pop %v216
    %v218 = vld [vmem:[%s5] sm:$0x1]
    %v219 = vmul.f32 %v217, %v218
    %v220 = vld [vmem:[%s6] sm:$0x1]
    %v221 = vmul.f32 %v204, %v219
    %v222 = vsub.f32 %v220, %v221
    %v223 = vlaneseq
    %v224 = vshrl.u32 %v223, 7
    %v225 = vsub.s32 0, %v224
    %v226 = vrot.slane %v219, %v225
    %v227 = vmul.f32 %v195, %v226
    %v229 = vlaneseq
    %v230 = vshrl.u32 %v229, 7
    %v231 = vsub.s32 0, %v230
    %v232 = vrot.slane %v222, %v231
    %v234 = vadd.f32 %v227, %v232
    %vm235 = vcmp.gt.f32.partialorder %v234, 0.0
    %v236 = vmul.f32 %v234, 0.01
    %v237 = vsel %vm235, %v234, %v236
    %v238 = vld [vmem:[#allocation8] sm:$0xff]
    %v239 = vld [vmem:[#allocation8 + $0x8] sm:$0xff]
    %v240 = vld [vmem:[#allocation8 + $0x10] sm:$0xff]
    %v241 = vld [vmem:[#allocation8 + $0x18] sm:$0xff]
    %v242 = vld [vmem:[#allocation8 + $0x20] sm:$0xff]
    %v243 = vld [vmem:[#allocation8 + $0x28] sm:$0xff]
    %v244 = vld [vmem:[#allocation8 + $0x30] sm:$0xff]
    %v245 = vld [vmem:[#allocation8 + $0x38] sm:$0xff]
    %v246 = vld [vmem:[#allocation8 + $0x40] sm:$0xff]
    %v247 = vld [vmem:[#allocation8 + $0x48] sm:$0xff]
    %v248 = vld [vmem:[#allocation8 + $0x50] sm:$0xff]
    %v249 = vld [vmem:[#allocation8 + $0x58] sm:$0xff]
    %v250 = vld [vmem:[#allocation8 + $0x60] sm:$0xff]
    %v251 = vld [vmem:[#allocation8 + $0x68] sm:$0xff]
    %v252 = vld [vmem:[#allocation8 + $0x70] sm:$0xff]
    %v253 = vld [vmem:[#allocation8 + $0x78] sm:$0xff]
    %v254 = vld [vmem:[%s9] sm:$0x1]
    %v256 = vlaneseq
    %v257 = vshrl.u32 %v256, 7
    %v258 = vsub.s32 0, %v257
    %v259 = vrot.slane %v254, %v258
    %261 = vmatprep.subr.mxu0 0.0
    %262 = vmatpush1.msra.mxu0 %v238
    %263 = vmatprep.subr.mxu0 0.0
    %264 = vmatpush1.msra.mxu0 %v239
    %265 = vmatprep.subr.mxu0 0.0
    %266 = vmatpush1.msra.mxu0 %v240
    %267 = vmatprep.subr.mxu0 0.0
    %268 = vmatpush1.msra.mxu0 %v241
    %269 = vmatprep.subr.mxu0 0.0
    %270 = vmatpush1.msra.mxu0 %v242
    %271 = vmatprep.subr.mxu0 0.0
    %272 = vmatpush1.msra.mxu0 %v243
    %273 = vmatprep.subr.mxu0 0.0
    %274 = vmatpush1.msra.mxu0 %v244
    %275 = vmatprep.subr.mxu0 0.0
    %276 = vmatpush1.msra.mxu0 %v245
    %277 = vmatprep.subr.mxu0 0.0
    %278 = vmatpush1.msra.mxu0 %v246
    %279 = vmatprep.subr.mxu0 0.0
    %280 = vmatpush1.msra.mxu0 %v247
    %281 = vmatprep.subr.mxu0 0.0
    %282 = vmatpush1.msra.mxu0 %v248
    %283 = vmatprep.subr.mxu0 0.0
    %284 = vmatpush1.msra.mxu0 %v249
    %285 = vmatprep.subr.mxu0 0.0
    %286 = vmatpush1.msra.mxu0 %v250
    %287 = vmatprep.subr.mxu0 0.0
    %288 = vmatpush1.msra.mxu0 %v251
    %289 = vmatprep.subr.mxu0 0.0
    %290 = vmatpush1.msra.mxu0 %v252
    %291 = vmatprep.subr.mxu0 0.0
    %292 = vmatpush1.msra.mxu0 %v253
    %293 = vmatprep.subr.mxu0 0.0
    %294 = vmatpush1.msra.mxu0 0.0
    %295 = vmatprep.subr.mxu0 0.0
    %296 = vmatpush1.msra.mxu0 0.0
    %297 = vmatprep.subr.mxu0 0.0
    %298 = vmatpush1.msra.mxu0 0.0
    %299 = vmatprep.subr.mxu0 0.0
    %300 = vmatpush1.msra.mxu0 0.0
    %301 = vmatprep.subr.mxu0 0.0
    %302 = vmatpush1.msra.mxu0 0.0
    %303 = vmatprep.subr.mxu0 0.0
    %304 = vmatpush1.msra.mxu0 0.0
    %305 = vmatprep.subr.mxu0 0.0
    %306 = vmatpush1.msra.mxu0 0.0
    %307 = vmatprep.subr.mxu0 0.0
    %308 = vmatpush1.msra.mxu0 0.0
    %309 = vmatprep.subr.mxu0 0.0
    %310 = vmatpush1.msra.mxu0 0.0
    %311 = vmatprep.subr.mxu0 0.0
    %312 = vmatpush1.msra.mxu0 0.0
    %313 = vmatprep.subr.mxu0 0.0
    %314 = vmatpush1.msra.mxu0 0.0
    %315 = vmatprep.subr.mxu0 0.0
    %316 = vmatpush1.msra.mxu0 0.0
    %317 = vmatprep.subr.mxu0 0.0
    %318 = vmatpush1.msra.mxu0 0.0
    %319 = vmatprep.subr.mxu0 0.0
    %320 = vmatpush1.msra.mxu0 0.0
    %321 = vmatprep.subr.mxu0 0.0
    %322 = vmatpush1.msra.mxu0 0.0
    %323 = vmatprep.subr.mxu0 0.0
    %324 = vmatpush1.msra.mxu0 0.0
    %325 = vmatprep.mubr.f32.mxu0 0.0
    %326 = vmatmul.mubr.f32.gmra.mrb[0].mxu0 %v237
    %v327 = vpop.f32.mrb[0].mxu0
    %v328 = vadd.f32 %v259, %v327
    %v329 = vpop.f32.mrb[0].mxu0
    %330 = vdwg.mxu0
    %v331 = vld [vmem:[%s2] sm:$0xff]
    %s332 = sld [smem:[#allocation9]]
    %v333 = vstv %s332
    %v334 = vmul.f32 %v331, %v333
    %s335 = sld [smem:[#allocation9 + $0x1]]
    %v336 = vstv %s335
    %v337 = vmul.f32 %v331, %v336
    %339 = vrot.lane.b32.xlu0 %v337, 127
    %v340 = vpop.permute.xlu0 %339
    %v342 = vadd.f32 %v334, %v340
    %s343 = sld [smem:[#allocation9 + $0x2]]
    %v344 = vstv %s343
    %v345 = vmul.f32 %v331, %v344
    %347 = vrot.lane.b32.xlu0 %v345, 126
    %v348 = vpop.permute.xlu0 %347
    %v350 = vadd.f32 %v342, %v348
    %vm351 = vcmask 113664
    %v352 = vsel %vm351, %v350, -inf
    %353 = vmax.xlane.f32.xlu0 %v352
    %v354 = vpop.xlane.xlu0 %353
    %s355 = sld [smem:[#allocation10]]
    %v356 = vstv %s355
    %v357 = vadd.f32 %v354, %v356
    %v358 = vld [vmem:[%s8] sm:$0x1]
    %v359 = vlaneseq
    %v360 = vshrl.u32 %v359, 7
    %v361 = vsub.s32 0, %v360
    %v362 = vrot.slane %v358, %v361
    %v363 = vmul.f32 %v357, %v362
    %v364 = vadd.f32 %v328, %v363
    %s365 = sld [smem:[#allocation9 + $0x80]]
    %v366 = vstv %s365
    %v367 = vmul.f32 %v331, %v366
    %s368 = sld [smem:[#allocation9 + $0x81]]
    %v369 = vstv %s368
    %v370 = vmul.f32 %v331, %v369
    %372 = vrot.lane.b32.xlu0 %v370, 127
    %v373 = vpop.permute.xlu0 %372
    %v375 = vadd.f32 %v367, %v373
    %s376 = sld [smem:[#allocation9 + $0x82]]
    %v377 = vstv %s376
    %v378 = vmul.f32 %v331, %v377
    %380 = vrot.lane.b32.xlu0 %v378, 126
    %v381 = vpop.permute.xlu0 %380
    %v383 = vadd.f32 %v375, %v381
    %v384 = vsel %vm351, %v383, -inf
    %385 = vmax.xlane.f32.xlu0 %v384
    %v386 = vpop.xlane.xlu0 %385
    %s387 = sld [smem:[#allocation10 + $0x1]]
    %v388 = vstv %s387
    %v389 = vadd.f32 %v386, %v388
    %v390 = vld [vmem:[%s8 + $0x1] sm:$0x1]
    %v391 = vlaneseq
    %v392 = vshrl.u32 %v391, 7
    %v393 = vsub.s32 0, %v392
    %v394 = vrot.slane %v390, %v393
    %v395 = vmul.f32 %v389, %v394
    %v396 = vadd.f32 %v364, %v395
    %s397 = sld [smem:[#allocation9 + $0x100]]
    %v398 = vstv %s397
    %v399 = vmul.f32 %v331, %v398
    %s400 = sld [smem:[#allocation9 + $0x101]]
    %v401 = vstv %s400
    %v402 = vmul.f32 %v331, %v401
    %404 = vrot.lane.b32.xlu0 %v402, 127
    %v405 = vpop.permute.xlu0 %404
    %v407 = vadd.f32 %v399, %v405
    %s408 = sld [smem:[#allocation9 + $0x102]]
    %v409 = vstv %s408
    %v410 = vmul.f32 %v331, %v409
    %412 = vrot.lane.b32.xlu0 %v410, 126
    %v413 = vpop.permute.xlu0 %412
    %v415 = vadd.f32 %v407, %v413
    %v416 = vsel %vm351, %v415, -inf
    %417 = vmax.xlane.f32.xlu0 %v416
    %v418 = vpop.xlane.xlu0 %417
    %s419 = sld [smem:[#allocation10 + $0x2]]
    %v420 = vstv %s419
    %v421 = vadd.f32 %v418, %v420
    %v422 = vld [vmem:[%s8 + $0x2] sm:$0x1]
    %v423 = vlaneseq
    %v424 = vshrl.u32 %v423, 7
    %v425 = vsub.s32 0, %v424
    %v426 = vrot.slane %v422, %v425
    %v427 = vmul.f32 %v421, %v426
    %v428 = vadd.f32 %v396, %v427
    %s429 = sld [smem:[#allocation9 + $0x180]]
    %v430 = vstv %s429
    %v431 = vmul.f32 %v331, %v430
    %s432 = sld [smem:[#allocation9 + $0x181]]
    %v433 = vstv %s432
    %v434 = vmul.f32 %v331, %v433
    %436 = vrot.lane.b32.xlu0 %v434, 127
    %v437 = vpop.permute.xlu0 %436
    %v439 = vadd.f32 %v431, %v437
    %s440 = sld [smem:[#allocation9 + $0x182]]
    %v441 = vstv %s440
    %v442 = vmul.f32 %v331, %v441
    %444 = vrot.lane.b32.xlu0 %v442, 126
    %v445 = vpop.permute.xlu0 %444
    %v447 = vadd.f32 %v439, %v445
    %v448 = vsel %vm351, %v447, -inf
    %449 = vmax.xlane.f32.xlu0 %v448
    %v450 = vpop.xlane.xlu0 %449
    %s451 = sld [smem:[#allocation10 + $0x3]]
    %v452 = vstv %s451
    %v453 = vadd.f32 %v450, %v452
    %v454 = vld [vmem:[%s8 + $0x3] sm:$0x1]
    %v455 = vlaneseq
    %v456 = vshrl.u32 %v455, 7
    %v457 = vsub.s32 0, %v456
    %v458 = vrot.slane %v454, %v457
    %v459 = vmul.f32 %v453, %v458
    %v460 = vadd.f32 %v428, %v459
    %vm461 = vcmp.gt.f32.partialorder %v460, 0.0
    %v462 = vmul.f32 %v460, 0.01
    %v463 = vsel %vm461, %v460, %v462
    %464 = vst [vmem:[#allocation12] sm:$0xff] %v463
    // Predicated region
    $region70: #{tpu_custom_call.1} parent=1 // pred_check
      _
    $region71: #{tpu_custom_call.1} parent=1 // pred_check_branch
      %466 = sbr.rel (0) target = $region73
    $region72: #{tpu_custom_call.1} parent=1 // pred_region
      %s468 = ssub.s32 128, 128
      %469 = vsyncadd [#allocation4], %s468
      %s471 = sshll.u32 [#allocation12], 4
      %s472 = int_to_ptr.vmem [resolvable:$true] %s471
      %474 = dma.vmem_to_hbm [thread:$0]  %s472, 128, %s12, [#allocation4]
    $region73: #{tpu_custom_call.1} parent=1 // pred_fallthru
      _
    // Predicated region
    $region74: #{tpu_custom_call.1} parent=1 // pred_check
      _
    $region75: #{tpu_custom_call.1} parent=1 // pred_check_branch
      %476 = sbr.rel (0) target = $region77
    $region76: #{tpu_custom_call.1} parent=1 // pred_region
      %477 = dma.done [#allocation4], 128
    $region77: #{tpu_custom_call.1} parent=1 // pred_fallthru
      _
    %478 = vsyncpa [#allocation3], 1
    %479 = vsyncpa [#allocation7], 1
    %480 = vsyncpa [#allocation4], 1
    %481 = vsyncpa [#allocation5], 1
    %482 = vsyncpa [#allocation11], 1

</llo_original>
